<compile_context>
chip_gen: v7x
topology: tpu7x:2x2x1
jax: 0.10.0
libtpu: 0.0.40
codegen_flags: <defaults>
</compile_context>

<pallas_src>
import jax
import jax.numpy as jnp
from jax.experimental import pallas as pl
from jax.experimental.pallas import tpu as pltpu


# ----------------------------------------------------------------------------- kernel
def gaussian_policy_kernel(x_ref, w1_ref, b1_ref, w2_ref, b2_ref,
                           w3_ref, b3_ref, out_ref):
    """One batch tile of the GaussianPolicy forward.

    x_ref   : (TB, obs)        caller dtype (f32) -- cast to bf16 in-kernel
    w*_ref  : full (padded) weights, bf16 -- VMEM-resident across the grid
    b*_ref  : full (padded) biases, f32
    out_ref : (TB, 2*act)      lanes = [mean | std]
    """
    # Layer 1: cast x on the VPU, MXU matmul (bf16 in, f32 acc), bias+ReLU f32.
    x_bf = x_ref[...].astype(w1_ref.dtype)
    h1 = jnp.dot(x_bf, w1_ref[...], preferred_element_type=jnp.float32)
    h1 = jnp.maximum(h1 + b1_ref[...], 0.0)

    # Layer 2.
    h2 = jnp.dot(h1.astype(w2_ref.dtype), w2_ref[...],
                 preferred_element_type=jnp.float32)
    h2 = jnp.maximum(h2 + b2_ref[...], 0.0)

    # Output head: single matmul over the full 2*action_dim width.
    out = jnp.dot(h2.astype(w3_ref.dtype), w3_ref[...],
                  preferred_element_type=jnp.float32) + b3_ref[...]

    act = out.shape[-1] // 2                                   # static
    # clamp(-20, 2) + exp only matter on the log_std lanes; select by lane
    # index to avoid slice/concat relayouts (exp goes to the EUP slot).
    lane = jax.lax.broadcasted_iota(jnp.int32, out.shape, dimension=1)
    std_all = jnp.exp(jnp.clip(out, -20.0, 2.0))
    out_ref[...] = jnp.where(lane >= act, std_all, out).astype(out_ref.dtype)


# ----------------------------------------------------------------------------- helpers
def _round_up(v, m):
    return ((v + m - 1) // m) * m


def _pad_to(a, axis, size):
    pad = size - a.shape[axis]
    if pad <= 0:
        return a
    widths = [(0, 0)] * a.ndim
    widths[axis] = (0, pad)
    return jnp.pad(a, widths)


def prepare_params(params):
    """One-time weight prep: pad hidden dim to a multiple of 128, cast matmul
    operands to bf16, keep biases f32. Do this ONCE, not per forward call."""
    w1, b1, w2, b2, w3, b3 = params
    hidden = w1.shape[1]
    h_pad = max(128, _round_up(hidden, 128))
    bf = jnp.bfloat16
    w1p = _pad_to(w1, 1, h_pad).astype(bf)
    b1p = _pad_to(b1.reshape(1, -1), 1, h_pad).astype(jnp.float32)
    w2p = _pad_to(_pad_to(w2, 0, h_pad), 1, h_pad).astype(bf)
    b2p = _pad_to(b2.reshape(1, -1), 1, h_pad).astype(jnp.float32)
    w3p = _pad_to(w3, 0, h_pad).astype(bf)
    b3p = b3.reshape(1, -1).astype(jnp.float32)
    return (w1p, b1p, w2p, b2p, w3p, b3p)


# ----------------------------------------------------------------------------- wrapper
def gaussian_policy_forward(x, prepared_params, *, tile_b=2048,
                            out_dtype=jnp.float32):
    """Returns (mean, std) of the Normal produced by GaussianPolicy.forward().

    `prepared_params` must come from prepare_params(raw_params)."""
    w1p, b1p, w2p, b2p, w3p, b3p = prepared_params
    B, obs_dim = x.shape
    assert w1p.shape[0] == obs_dim
    h_pad = w1p.shape[1]
    out_dim = w3p.shape[1]
    action_dim = out_dim // 2

    # ---- balanced batch tiling ----------------------------------------------
    SUB = 16                                    # bf16 sublane packing
    num_tiles = pl.cdiv(B, tile_b)
    if B >= 2 * SUB:
        num_tiles = max(num_tiles, 2)           # keep both v7x TensorCores busy
    tb = _round_up(pl.cdiv(B, num_tiles), SUB)  # minimizes batch-padding waste
    grid_b = pl.cdiv(B, tb)
    b_padded = grid_b * tb

    # x goes in as-is (no bf16 pre-cast); only pad rows if the grid needs it.
    xp = x if b_padded == B else jnp.pad(x, ((0, b_padded - B), (0, 0)))

    # ---- VMEM budget (declare explicitly; v5e default scoped VMEM is 16 MiB)
    weight_bytes = sum(int(a.size) * a.dtype.itemsize
                       for a in (w1p, b1p, w2p, b2p, w3p, b3p))
    out_isz = jnp.dtype(out_dtype).itemsize
    tile_io_bytes = 2 * tb * obs_dim * xp.dtype.itemsize + 2 * tb * out_dim * out_isz
    temp_bytes = tb * h_pad * (4 + 4 + 2 + 2) + tb * obs_dim * 2  # h1/h2 f32 + bf16 temps
    vmem_limit = int(min(max(2 * (2 * weight_bytes + tile_io_bytes + temp_bytes),
                             32 << 20), 64 << 20))

    flops = 2 * b_padded * (obs_dim * h_pad + h_pad * h_pad + h_pad * out_dim)
    bytes_accessed = (int(xp.size) * xp.dtype.itemsize
                      + weight_bytes
                      + b_padded * out_dim * out_isz)
    cost = pl.CostEstimate(flops=flops,
                           transcendentals=b_padded * out_dim,
                           bytes_accessed=bytes_accessed)

    def build_call(single_buffer_weights):
        def resident(arr):
            # Full-shape block, same index every step -> stays VMEM-resident.
            if single_buffer_weights:
                return pl.BlockSpec(arr.shape, lambda i: (0, 0),
                                    pipeline_mode=pl.Buffered(buffer_count=1))
            return pl.BlockSpec(arr.shape, lambda i: (0, 0))

        return pl.pallas_call(
            gaussian_policy_kernel,
            out_shape=jax.ShapeDtypeStruct((b_padded, out_dim), out_dtype),
            grid=(grid_b,),
            in_specs=[
                pl.BlockSpec((tb, obs_dim), lambda i: (i, 0)),   # x: batch-tiled
                resident(w1p), resident(b1p),
                resident(w2p), resident(b2p),
                resident(w3p), resident(b3p),
            ],
            out_specs=pl.BlockSpec((tb, out_dim), lambda i: (i, 0)),
            compiler_params=pltpu.CompilerParams(
                dimension_semantics=("parallel",),
                vmem_limit_bytes=vmem_limit),
            cost_estimate=cost,
        )

    try:
        out = build_call(True)(xp, w1p, b1p, w2p, b2p, w3p, b3p)
    except Exception:
        # Fallback in case this JAX build rejects Buffered(buffer_count=1);
        # double-buffered resident weights are merely a little VMEM waste.
        out = build_call(False)(xp, w1p, b1p, w2p, b2p, w3p, b3p)

    mean = out[:B, :action_dim]
    std = out[:B, action_dim:]
    return mean, std


# ----------------------------------------------------------------------------- reference / test
def init_params(key, obs_dim, hidden, action_dim):
    """Deterministic synthetic parameters (shapes match the PyTorch module)."""
    k1, k2, k3, k4, k5, k6 = jax.random.split(key, 6)
    s = 0.1
    w1 = s * jax.random.normal(k1, (obs_dim, hidden), jnp.float32)
    b1 = s * jax.random.normal(k2, (hidden,), jnp.float32)
    w2 = s * jax.random.normal(k3, (hidden, hidden), jnp.float32)
    b2 = s * jax.random.normal(k4, (hidden,), jnp.float32)
    w3 = s * jax.random.normal(k5, (hidden, 2 * action_dim), jnp.float32)
    b3 = s * jax.random.normal(k6, (2 * action_dim,), jnp.float32)
    return w1, b1, w2, b2, w3, b3


def reference_forward(x, params, matmul_dtype=jnp.float32):
    w1, b1, w2, b2, w3, b3 = params
    d = matmul_dtype
    h1 = jnp.maximum(jnp.dot(x.astype(d), w1.astype(d),
                             preferred_element_type=jnp.float32) + b1, 0.0)
    h2 = jnp.maximum(jnp.dot(h1.astype(d), w2.astype(d),
                             preferred_element_type=jnp.float32) + b2, 0.0)
    out = jnp.dot(h2.astype(d), w3.astype(d),
                  preferred_element_type=jnp.float32) + b3
    act = w3.shape[1] // 2
    mean = out[:, :act]
    std = jnp.exp(jnp.clip(out[:, act:], -20.0, 2.0))
    return mean, std


def _check(x, params, prepped, act_dim):
    mean, std = gaussian_policy_forward(x, prepped)
    jax.block_until_ready((mean, std))
    B = x.shape[0]
    assert mean.shape == (B, act_dim) and std.shape == (B, act_dim)

    # Strict check against a reference using the same bf16-matmul / f32-epilogue recipe.
    mean_bf, std_bf = reference_forward(x, params, matmul_dtype=jnp.bfloat16)
    assert jnp.allclose(mean, mean_bf, atol=1e-3, rtol=1e-3)
    assert jnp.allclose(std, std_bf, atol=1e-3, rtol=1e-3)

    # Looser check against the pure-f32 reference (bf16 matmul rounding only).
    mean_f32, std_f32 = reference_forward(x, params, matmul_dtype=jnp.float32)
    assert jnp.allclose(mean, mean_f32, atol=5e-2, rtol=5e-2)
    assert jnp.allclose(std, std_f32, atol=5e-2, rtol=5e-2)


if __name__ == "__main__":
    # Small shapes consistent with the module: obs_dim=32, hidden_sizes=64,
    # action_dim=8 (network output dim = 2*action_dim = 16).
    OBS, HID, ACT = 32, 64, 8

    key = jax.random.PRNGKey(0)
    kp, kx1, kx2 = jax.random.split(key, 3)
    params = init_params(kp, OBS, HID, ACT)
    prepped = jax.block_until_ready(prepare_params(params))   # pay pad/cast once

    # Case 1: tiny batch (single grid step).
    x_small = jax.random.normal(kx1, (8, OBS), jnp.float32)
    _check(x_small, params, prepped, ACT)

    # Case 2: awkward batch (exercises balanced 2-tile grid + row padding).
    x_big = jax.random.normal(kx2, (40, OBS), jnp.float32)
    _check(x_big, params, prepped, ACT)

    # TODO(synk): sampling / rsample / log_prob / tanh-squashing + action-bounds
    # rescaling (get_action, sample_or_likelihood) are distribution-level ops
    # performed outside the kernel on (mean, std).
    print("KERNEL_OK")
</pallas_src>

<mosaic_0001>
module attributes {stable_mosaic.version = 11 : i64} {
  func.func @gaussian_policy_kernel(%arg0: i32, %arg1: memref<16x32xf32, #tpu.memory_space<vmem>>, %arg2: memref<32x128xbf16, #tpu.memory_space<vmem>>, %arg3: memref<1x128xf32, #tpu.memory_space<vmem>>, %arg4: memref<128x128xbf16, #tpu.memory_space<vmem>>, %arg5: memref<1x128xf32, #tpu.memory_space<vmem>>, %arg6: memref<128x16xbf16, #tpu.memory_space<vmem>>, %arg7: memref<1x16xf32, #tpu.memory_space<vmem>>, %arg8: memref<16x16xf32, #tpu.memory_space<vmem>>) attributes {dimension_semantics = [#tpu.dimension_semantics<parallel>], iteration_bounds = array<i64: 1>, scalar_prefetch = 0 : i64, scratch_operands = 0 : i64, tpu.core_type = #tpu.core_type<tc>, window_params = [{transform_indices = @transform_0, window_bounds = array<i64: 16, 32>}, {pipeline_mode = #tpu.pipeline_mode<synchronous>, transform_indices = @transform_1, window_bounds = array<i64: 32, 128>}, {pipeline_mode = #tpu.pipeline_mode<synchronous>, transform_indices = @transform_2, window_bounds = array<i64: 1, 128>}, {pipeline_mode = #tpu.pipeline_mode<synchronous>, transform_indices = @transform_3, window_bounds = array<i64: 128, 128>}, {pipeline_mode = #tpu.pipeline_mode<synchronous>, transform_indices = @transform_4, window_bounds = array<i64: 1, 128>}, {pipeline_mode = #tpu.pipeline_mode<synchronous>, transform_indices = @transform_5, window_bounds = array<i64: 128, 16>}, {pipeline_mode = #tpu.pipeline_mode<synchronous>, transform_indices = @transform_6, window_bounds = array<i64: 1, 16>}, {transform_indices = @transform_7, window_bounds = array<i64: 16, 16>}]} {
    %c0 = arith.constant 0 : index
    %c0_0 = arith.constant 0 : index
    %0 = vector.load %arg1[%c0, %c0_0] : memref<16x32xf32, #tpu.memory_space<vmem>>, vector<16x32xf32>
    %1 = arith.truncf %0 : vector<16x32xf32> to vector<16x32xbf16>
    %c0_1 = arith.constant 0 : index
    %c0_2 = arith.constant 0 : index
    %2 = vector.load %arg2[%c0_1, %c0_2] : memref<32x128xbf16, #tpu.memory_space<vmem>>, vector<32x128xbf16>
    %cst = arith.constant dense<0.000000e+00> : vector<16x128xf32>
    %3 = tpu.matmul %1, %2, %cst {dimension_numbers = #tpu.dot_dimension_numbers<[1], [0], [0], [1], [0, 0, 1, 1], [], []>} : vector<16x32xbf16>, vector<32x128xbf16>, vector<16x128xf32> -> vector<16x128xf32>
    %c0_3 = arith.constant 0 : index
    %c0_4 = arith.constant 0 : index
    %4 = vector.load %arg3[%c0_3, %c0_4] : memref<1x128xf32, #tpu.memory_space<vmem>>, vector<1x128xf32>
    %5 = vector.broadcast %4 : vector<1x128xf32> to vector<16x128xf32>
    %6 = arith.addf %3, %5 : vector<16x128xf32>
    %cst_5 = arith.constant 0.000000e+00 : f32
    %7 = vector.broadcast %cst_5 : f32 to vector<16x128xf32>
    %8 = arith.maximumf %6, %7 : vector<16x128xf32>
    %9 = arith.truncf %8 : vector<16x128xf32> to vector<16x128xbf16>
    %c0_6 = arith.constant 0 : index
    %c0_7 = arith.constant 0 : index
    %10 = vector.load %arg4[%c0_6, %c0_7] : memref<128x128xbf16, #tpu.memory_space<vmem>>, vector<128x128xbf16>
    %cst_8 = arith.constant dense<0.000000e+00> : vector<16x128xf32>
    %11 = tpu.matmul %9, %10, %cst_8 {dimension_numbers = #tpu.dot_dimension_numbers<[1], [0], [0], [1], [0, 0, 1, 1], [], []>} : vector<16x128xbf16>, vector<128x128xbf16>, vector<16x128xf32> -> vector<16x128xf32>
    %c0_9 = arith.constant 0 : index
    %c0_10 = arith.constant 0 : index
    %12 = vector.load %arg5[%c0_9, %c0_10] : memref<1x128xf32, #tpu.memory_space<vmem>>, vector<1x128xf32>
    %13 = vector.broadcast %12 : vector<1x128xf32> to vector<16x128xf32>
    %14 = arith.addf %11, %13 : vector<16x128xf32>
    %cst_11 = arith.constant 0.000000e+00 : f32
    %15 = vector.broadcast %cst_11 : f32 to vector<16x128xf32>
    %16 = arith.maximumf %14, %15 : vector<16x128xf32>
    %17 = arith.truncf %16 : vector<16x128xf32> to vector<16x128xbf16>
    %c0_12 = arith.constant 0 : index
    %c0_13 = arith.constant 0 : index
    %18 = vector.load %arg6[%c0_12, %c0_13] : memref<128x16xbf16, #tpu.memory_space<vmem>>, vector<128x16xbf16>
    %cst_14 = arith.constant dense<0.000000e+00> : vector<16x16xf32>
    %19 = tpu.matmul %17, %18, %cst_14 {dimension_numbers = #tpu.dot_dimension_numbers<[1], [0], [0], [1], [0, 0, 1, 1], [], []>} : vector<16x128xbf16>, vector<128x16xbf16>, vector<16x16xf32> -> vector<16x16xf32>
    %c0_15 = arith.constant 0 : index
    %c0_16 = arith.constant 0 : index
    %20 = vector.load %arg7[%c0_15, %c0_16] : memref<1x16xf32, #tpu.memory_space<vmem>>, vector<1x16xf32>
    %21 = vector.broadcast %20 : vector<1x16xf32> to vector<16x16xf32>
    %22 = arith.addf %19, %21 : vector<16x16xf32>
    %23 = tpu.iota {dimensions = array<i32: 1>} : vector<16x16xi32>
    %cst_17 = arith.constant -2.000000e+01 : f32
    %cst_18 = arith.constant 2.000000e+00 : f32
    %24 = vector.broadcast %cst_17 : f32 to vector<16x16xf32>
    %25 = arith.maximumf %24, %22 : vector<16x16xf32>
    %26 = vector.broadcast %cst_18 : f32 to vector<16x16xf32>
    %27 = arith.minimumf %26, %25 : vector<16x16xf32>
    %28 = math.exp %27 : vector<16x16xf32>
    %c8_i32 = arith.constant 8 : i32
    %29 = vector.broadcast %c8_i32 : i32 to vector<16x16xi32>
    %30 = arith.cmpi sge, %23, %29 : vector<16x16xi32>
    %31 = arith.select %30, %28, %22 : vector<16x16xi1>, vector<16x16xf32>
    %c0_19 = arith.constant 0 : index
    %c0_20 = arith.constant 0 : index
    %32 = vector.load %arg8[%c0_19, %c0_20] : memref<16x16xf32, #tpu.memory_space<vmem>>, vector<16x16xf32>
    tpu.vector_store %arg8[%c0_19, %c0_20], %31 {strides = array<i32>} : memref<16x16xf32, #tpu.memory_space<vmem>>, vector<16x16xf32>,
    return
  }
  func.func @transform_0(%arg0: i32) -> (i32, i32) {
    %c0_i32 = arith.constant 0 : i32
    %c0_i32_0 = arith.constant 0 : i32
    return %arg0, %c0_i32 : i32, i32
  }
  func.func @transform_1(%arg0: i32) -> (i32, i32) {
    %c0_i32 = arith.constant 0 : i32
    %c0_i32_0 = arith.constant 0 : i32
    %c0_i32_1 = arith.constant 0 : i32
    return %c0_i32, %c0_i32_0 : i32, i32
  }
  func.func @transform_2(%arg0: i32) -> (i32, i32) {
    %c0_i32 = arith.constant 0 : i32
    %c0_i32_0 = arith.constant 0 : i32
    %c0_i32_1 = arith.constant 0 : i32
    return %c0_i32, %c0_i32_0 : i32, i32
  }
  func.func @transform_3(%arg0: i32) -> (i32, i32) {
    %c0_i32 = arith.constant 0 : i32
    %c0_i32_0 = arith.constant 0 : i32
    %c0_i32_1 = arith.constant 0 : i32
    return %c0_i32, %c0_i32_0 : i32, i32
  }
  func.func @transform_4(%arg0: i32) -> (i32, i32) {
    %c0_i32 = arith.constant 0 : i32
    %c0_i32_0 = arith.constant 0 : i32
    %c0_i32_1 = arith.constant 0 : i32
    return %c0_i32, %c0_i32_0 : i32, i32
  }
  func.func @transform_5(%arg0: i32) -> (i32, i32) {
    %c0_i32 = arith.constant 0 : i32
    %c0_i32_0 = arith.constant 0 : i32
    %c0_i32_1 = arith.constant 0 : i32
    return %c0_i32, %c0_i32_0 : i32, i32
  }
  func.func @transform_6(%arg0: i32) -> (i32, i32) {
    %c0_i32 = arith.constant 0 : i32
    %c0_i32_0 = arith.constant 0 : i32
    %c0_i32_1 = arith.constant 0 : i32
    return %c0_i32, %c0_i32_0 : i32, i32
  }
  func.func @transform_7(%arg0: i32) -> (i32, i32) {
    %c0_i32 = arith.constant 0 : i32
    %c0_i32_0 = arith.constant 0 : i32
    return %arg0, %c0_i32 : i32, i32
  }
}

module attributes {stable_mosaic.version = 11 : i64} {
  func.func @gaussian_policy_kernel(%arg0: i32, %arg1: memref<16x32xf32, #tpu.memory_space<vmem>>, %arg2: memref<32x128xbf16, #tpu.memory_space<vmem>>, %arg3: memref<1x128xf32, #tpu.memory_space<vmem>>, %arg4: memref<128x128xbf16, #tpu.memory_space<vmem>>, %arg5: memref<1x128xf32, #tpu.memory_space<vmem>>, %arg6: memref<128x16xbf16, #tpu.memory_space<vmem>>, %arg7: memref<1x16xf32, #tpu.memory_space<vmem>>, %arg8: memref<16x16xf32, #tpu.memory_space<vmem>>) attributes {dimension_semantics = [#tpu.dimension_semantics<parallel>], iteration_bounds = array<i64: 1>, scalar_prefetch = 0 : i64, scratch_operands = 0 : i64, tpu.core_type = #tpu.core_type<tc>, window_params = [{transform_indices = @transform_0, window_bounds = array<i64: 16, 32>}, {pipeline_mode = #tpu.pipeline_mode<synchronous>, transform_indices = @transform_1, window_bounds = array<i64: 32, 128>}, {pipeline_mode = #tpu.pipeline_mode<synchronous>, transform_indices = @transform_2, window_bounds = array<i64: 1, 128>}, {pipeline_mode = #tpu.pipeline_mode<synchronous>, transform_indices = @transform_3, window_bounds = array<i64: 128, 128>}, {pipeline_mode = #tpu.pipeline_mode<synchronous>, transform_indices = @transform_4, window_bounds = array<i64: 1, 128>}, {pipeline_mode = #tpu.pipeline_mode<synchronous>, transform_indices = @transform_5, window_bounds = array<i64: 128, 16>}, {pipeline_mode = #tpu.pipeline_mode<synchronous>, transform_indices = @transform_6, window_bounds = array<i64: 1, 16>}, {transform_indices = @transform_7, window_bounds = array<i64: 16, 16>}]} {
    %c0 = arith.constant 0 : index
    %c0_0 = arith.constant 0 : index
    %0 = vector.load %arg1[%c0, %c0_0] : memref<16x32xf32, #tpu.memory_space<vmem>>, vector<16x32xf32>
    %1 = arith.truncf %0 : vector<16x32xf32> to vector<16x32xbf16>
    %c0_1 = arith.constant 0 : index
    %c0_2 = arith.constant 0 : index
    %2 = vector.load %arg2[%c0_1, %c0_2] : memref<32x128xbf16, #tpu.memory_space<vmem>>, vector<32x128xbf16>
    %cst = arith.constant dense<0.000000e+00> : vector<16x128xf32>
    %3 = tpu.matmul %1, %2, %cst {dimension_numbers = #tpu.dot_dimension_numbers<[1], [0], [0], [1], [0, 0, 1, 1], [], []>} : vector<16x32xbf16>, vector<32x128xbf16>, vector<16x128xf32> -> vector<16x128xf32>
    %c0_3 = arith.constant 0 : index
    %c0_4 = arith.constant 0 : index
    %4 = vector.load %arg3[%c0_3, %c0_4] : memref<1x128xf32, #tpu.memory_space<vmem>>, vector<1x128xf32>
    %5 = vector.broadcast %4 : vector<1x128xf32> to vector<16x128xf32>
    %6 = arith.addf %3, %5 : vector<16x128xf32>
    %cst_5 = arith.constant 0.000000e+00 : f32
    %7 = vector.broadcast %cst_5 : f32 to vector<16x128xf32>
    %8 = arith.maximumf %6, %7 : vector<16x128xf32>
    %9 = arith.truncf %8 : vector<16x128xf32> to vector<16x128xbf16>
    %c0_6 = arith.constant 0 : index
    %c0_7 = arith.constant 0 : index
    %10 = vector.load %arg4[%c0_6, %c0_7] : memref<128x128xbf16, #tpu.memory_space<vmem>>, vector<128x128xbf16>
    %cst_8 = arith.constant dense<0.000000e+00> : vector<16x128xf32>
    %11 = tpu.matmul %9, %10, %cst_8 {dimension_numbers = #tpu.dot_dimension_numbers<[1], [0], [0], [1], [0, 0, 1, 1], [], []>} : vector<16x128xbf16>, vector<128x128xbf16>, vector<16x128xf32> -> vector<16x128xf32>
    %c0_9 = arith.constant 0 : index
    %c0_10 = arith.constant 0 : index
    %12 = vector.load %arg5[%c0_9, %c0_10] : memref<1x128xf32, #tpu.memory_space<vmem>>, vector<1x128xf32>
    %13 = vector.broadcast %12 : vector<1x128xf32> to vector<16x128xf32>
    %14 = arith.addf %11, %13 : vector<16x128xf32>
    %cst_11 = arith.constant 0.000000e+00 : f32
    %15 = vector.broadcast %cst_11 : f32 to vector<16x128xf32>
    %16 = arith.maximumf %14, %15 : vector<16x128xf32>
    %17 = arith.truncf %16 : vector<16x128xf32> to vector<16x128xbf16>
    %c0_12 = arith.constant 0 : index
    %c0_13 = arith.constant 0 : index
    %18 = vector.load %arg6[%c0_12, %c0_13] : memref<128x16xbf16, #tpu.memory_space<vmem>>, vector<128x16xbf16>
    %cst_14 = arith.constant dense<0.000000e+00> : vector<16x16xf32>
    %19 = tpu.matmul %17, %18, %cst_14 {dimension_numbers = #tpu.dot_dimension_numbers<[1], [0], [0], [1], [0, 0, 1, 1], [], []>} : vector<16x128xbf16>, vector<128x16xbf16>, vector<16x16xf32> -> vector<16x16xf32>
    %c0_15 = arith.constant 0 : index
    %c0_16 = arith.constant 0 : index
    %20 = vector.load %arg7[%c0_15, %c0_16] : memref<1x16xf32, #tpu.memory_space<vmem>>, vector<1x16xf32>
    %21 = vector.broadcast %20 : vector<1x16xf32> to vector<16x16xf32>
    %22 = arith.addf %19, %21 : vector<16x16xf32>
    %23 = tpu.iota {dimensions = array<i32: 1>} : vector<16x16xi32>
    %cst_17 = arith.constant -2.000000e+01 : f32
    %cst_18 = arith.constant 2.000000e+00 : f32
    %24 = vector.broadcast %cst_17 : f32 to vector<16x16xf32>
    %25 = arith.maximumf %24, %22 : vector<16x16xf32>
    %26 = vector.broadcast %cst_18 : f32 to vector<16x16xf32>
    %27 = arith.minimumf %26, %25 : vector<16x16xf32>
    %28 = math.exp %27 : vector<16x16xf32>
    %c8_i32 = arith.constant 8 : i32
    %29 = vector.broadcast %c8_i32 : i32 to vector<16x16xi32>
    %30 = arith.cmpi sge, %23, %29 : vector<16x16xi32>
    %31 = arith.select %30, %28, %22 : vector<16x16xi1>, vector<16x16xf32>
    %c0_19 = arith.constant 0 : index
    %c0_20 = arith.constant 0 : index
    %32 = vector.load %arg8[%c0_19, %c0_20] : memref<16x16xf32, #tpu.memory_space<vmem>>, vector<16x16xf32>
    tpu.vector_store %arg8[%c0_19, %c0_20], %31 {strides = array<i32>} : memref<16x16xf32, #tpu.memory_space<vmem>>, vector<16x16xf32>,
    return
  }
  func.func @transform_0(%arg0: i32) -> (i32, i32) {
    %c0_i32 = arith.constant 0 : i32
    %c0_i32_0 = arith.constant 0 : i32
    return %arg0, %c0_i32 : i32, i32
  }
  func.func @transform_1(%arg0: i32) -> (i32, i32) {
    %c0_i32 = arith.constant 0 : i32
    %c0_i32_0 = arith.constant 0 : i32
    %c0_i32_1 = arith.constant 0 : i32
    return %c0_i32, %c0_i32_0 : i32, i32
  }
  func.func @transform_2(%arg0: i32) -> (i32, i32) {
    %c0_i32 = arith.constant 0 : i32
    %c0_i32_0 = arith.constant 0 : i32
    %c0_i32_1 = arith.constant 0 : i32
    return %c0_i32, %c0_i32_0 : i32, i32
  }
  func.func @transform_3(%arg0: i32) -> (i32, i32) {
    %c0_i32 = arith.constant 0 : i32
    %c0_i32_0 = arith.constant 0 : i32
    %c0_i32_1 = arith.constant 0 : i32
    return %c0_i32, %c0_i32_0 : i32, i32
  }
  func.func @transform_4(%arg0: i32) -> (i32, i32) {
    %c0_i32 = arith.constant 0 : i32
    %c0_i32_0 = arith.constant 0 : i32
    %c0_i32_1 = arith.constant 0 : i32
    return %c0_i32, %c0_i32_0 : i32, i32
  }
  func.func @transform_5(%arg0: i32) -> (i32, i32) {
    %c0_i32 = arith.constant 0 : i32
    %c0_i32_0 = arith.constant 0 : i32
    %c0_i32_1 = arith.constant 0 : i32
    return %c0_i32, %c0_i32_0 : i32, i32
  }
  func.func @transform_6(%arg0: i32) -> (i32, i32) {
    %c0_i32 = arith.constant 0 : i32
    %c0_i32_0 = arith.constant 0 : i32
    %c0_i32_1 = arith.constant 0 : i32
    return %c0_i32, %c0_i32_0 : i32, i32
  }
  func.func @transform_7(%arg0: i32) -> (i32, i32) {
    %c0_i32 = arith.constant 0 : i32
    %c0_i32_0 = arith.constant 0 : i32
    return %arg0, %c0_i32 : i32, i32
  }
}

</mosaic_0001>

<llo_original>
// kernel: tpu_custom_call.1
$region0: #{tpu_custom_call.1}
  #allocation0 [shape = 'u32[]', space=smem, size = 0x4, offset = 0x4, fixed_abs, tag = 'smem constant byte address 0x4 - core index']
  #allocation1 [shape = 'u32[144,128]{1,0:T(1,128)}', space=vmem, size = 0x12000, scoped, tag = 'internal scratch']
  %s0 = inlined_call_operand.vmem [shape: f32[16,32], index: 0, kind: input, shape index: {}]
  %s1 = inlined_call_operand.hbm [shape: bf16[32,128], index: 1, kind: input, shape index: {}]
  %s2 = inlined_call_operand.vmem [shape: f32[1,128], index: 2, kind: input, shape index: {}]
  %s3 = inlined_call_operand.vmem [shape: bf16[128,128], index: 3, kind: input, shape index: {}]
  %s4 = inlined_call_operand.vmem [shape: f32[1,128], index: 4, kind: input, shape index: {}]
  %s5 = inlined_call_operand.vmem [shape: bf16[128,16], index: 5, kind: input, shape index: {}]
  %s6 = inlined_call_operand.vmem [shape: f32[1,16], index: 6, kind: input, shape index: {}]
  %s7 = inlined_call_operand.hbm [shape: f32[16,16], index: 7, kind: output, shape index: {}]
  %s8 = sld [smem:[#allocation0]]
  $region42: #{tpu_custom_call.1} parent=0
    _
  %s10 = ssub.s32 1, %s8
  %s11 = scalar_select 0, %s10, %s8
  $region1: #{tpu_custom_call.1} parent=0
    #allocation2 [shape = 'u8[8192]{0}', space=vmem, size = 0x2000, scoped, tag = 'input window, operand 1, single buffered']
    #allocation3 [shape = 's32[1]{0}', space=sflag, size = 0x4, scoped, tag = 'scoped memory for tpu_custom_call.1']
    #allocation4 [shape = 's32[1]{0}', space=sflag, size = 0x4, scoped, tag = 'scoped memory for tpu_custom_call.1']
    #allocation5 [shape = 'u8[8192]{0}', space=vmem, size = 0x2000, scoped, tag = 'output window, operand 0, single buffered']
    %12 = vsyncpa [#allocation3], 0
    %13 = vsyncpa [#allocation4], 0
    // Predicated region
    $region2: #{tpu_custom_call.1} parent=1 // pred_check
      _
    $region3: #{tpu_custom_call.1} parent=1 // pred_check_branch
      %15 = sbr.rel (0) target = $region5
    $region4: #{tpu_custom_call.1} parent=1 // pred_region
      _
    $region5: #{tpu_custom_call.1} parent=1 // pred_fallthru
      _
    // Predicated region
    $region6: #{tpu_custom_call.1} parent=1 // pred_check
      _
    $region7: #{tpu_custom_call.1} parent=1 // pred_check_branch
      %17 = sbr.rel (0) target = $region9
    $region8: #{tpu_custom_call.1} parent=1 // pred_region
      %s19 = ssub.s32 256, 256
      %20 = vsyncadd [#allocation3], %s19
      %s21 = sshll.u32 [#allocation2], 4
      %s22 = int_to_ptr.vmem [resolvable:$true] %s21
      %27 = dma.hbm_to_vmem [thread:$0]  %s1, 256, %s22, [#allocation3], 64, 64, 4
    $region9: #{tpu_custom_call.1} parent=1 // pred_fallthru
      _
    // Predicated region
    $region10: #{tpu_custom_call.1} parent=1 // pred_check
      _
    $region11: #{tpu_custom_call.1} parent=1 // pred_check_branch
      %29 = sbr.rel (0) target = $region13
    $region12: #{tpu_custom_call.1} parent=1 // pred_region
      _
    $region13: #{tpu_custom_call.1} parent=1 // pred_fallthru
      _
    // Predicated region
    $region14: #{tpu_custom_call.1} parent=1 // pred_check
      _
    $region15: #{tpu_custom_call.1} parent=1 // pred_check_branch
      %31 = sbr.rel (0) target = $region17
    $region16: #{tpu_custom_call.1} parent=1 // pred_region
      _
    $region17: #{tpu_custom_call.1} parent=1 // pred_fallthru
      _
    // Predicated region
    $region18: #{tpu_custom_call.1} parent=1 // pred_check
      _
    $region19: #{tpu_custom_call.1} parent=1 // pred_check_branch
      %33 = sbr.rel (0) target = $region21
    $region20: #{tpu_custom_call.1} parent=1 // pred_region
      _
    $region21: #{tpu_custom_call.1} parent=1 // pred_fallthru
      _
    // Predicated region
    $region22: #{tpu_custom_call.1} parent=1 // pred_check
      _
    $region23: #{tpu_custom_call.1} parent=1 // pred_check_branch
      %35 = sbr.rel (0) target = $region25
    $region24: #{tpu_custom_call.1} parent=1 // pred_region
      _
    $region25: #{tpu_custom_call.1} parent=1 // pred_fallthru
      _
    // Predicated region
    $region26: #{tpu_custom_call.1} parent=1 // pred_check
      _
    $region27: #{tpu_custom_call.1} parent=1 // pred_check_branch
      %37 = sbr.rel (0) target = $region29
    $region28: #{tpu_custom_call.1} parent=1 // pred_region
      _
    $region29: #{tpu_custom_call.1} parent=1 // pred_fallthru
      _
    // Predicated region
    $region30: #{tpu_custom_call.1} parent=1 // pred_check
      _
    $region31: #{tpu_custom_call.1} parent=1 // pred_check_branch
      %39 = sbr.rel (0) target = $region33
    $region32: #{tpu_custom_call.1} parent=1 // pred_region
      %40 = dma.done [#allocation3], 256
    $region33: #{tpu_custom_call.1} parent=1 // pred_fallthru
      _
    %v42 = vld [vmem:[%s0] sm:$0xff]
    %v43 = vld [vmem:[%s0 + $0x8] sm:$0xff]
    %v44 = vpack.c.bf16 %v43, %v42
    %v45 = vld [vmem:[#allocation2] sm:$0xf]
    %v46 = vld [vmem:[#allocation2 + $0x4] sm:$0xf]
    %v47 = vld [vmem:[#allocation2 + $0x8] sm:$0xf]
    %v48 = vld [vmem:[#allocation2 + $0xc] sm:$0xf]
    %v49 = vld [vmem:[%s2] sm:$0x1]
    %v51 = vlaneseq
    %v52 = vshrl.u32 %v51, 7
    %v53 = vsub.s32 0, %v52
    %v54 = vrot.slane %v49, %v53
    %v60 = vunpack.c.l.b16 %v45
    %v61 = vunpack.c.l.b16 %v46
    %v62 = vunpack.c.l.b16 %v47
    %v63 = vunpack.c.l.b16 %v48
    %v64 = vpack.c.b16 %v61, %v60
    %v65 = vpack.c.b16 %v63, %v62
    %vm68 = vcmask 261120
    %v70 = vsel %vm68, %v44, 0
    %72 = vmatprep.subr.bf16.mxu0 0
    %73 = vmatpush1.bf16.msra.mxu0 %v64
    %74 = vmatprep.subr.bf16.mxu0 0
    %75 = vmatpush1.bf16.msra.mxu0 %v65
    %76 = vmatprep.subr.bf16.mxu0 0
    %77 = vmatpush1.bf16.msra.mxu0 0
    %78 = vmatprep.subr.bf16.mxu0 0
    %79 = vmatpush1.bf16.msra.mxu0 0
    %80 = vmatprep.subr.bf16.mxu0 0
    %81 = vmatpush1.bf16.msra.mxu0 0
    %82 = vmatprep.subr.bf16.mxu0 0
    %83 = vmatpush1.bf16.msra.mxu0 0
    %84 = vmatprep.subr.bf16.mxu0 0
    %85 = vmatpush1.bf16.msra.mxu0 0
    %86 = vmatprep.subr.bf16.mxu0 0
    %87 = vmatpush1.bf16.msra.mxu0 0
    %88 = vmatprep.subr.bf16.mxu0 0
    %89 = vmatpush1.bf16.msra.mxu0 0
    %90 = vmatprep.subr.bf16.mxu0 0
    %91 = vmatpush1.bf16.msra.mxu0 0
    %92 = vmatprep.subr.bf16.mxu0 0
    %93 = vmatpush1.bf16.msra.mxu0 0
    %94 = vmatprep.subr.bf16.mxu0 0
    %95 = vmatpush1.bf16.msra.mxu0 0
    %96 = vmatprep.subr.bf16.mxu0 0
    %97 = vmatpush1.bf16.msra.mxu0 0
    %98 = vmatprep.subr.bf16.mxu0 0
    %99 = vmatpush1.bf16.msra.mxu0 0
    %100 = vmatprep.subr.bf16.mxu0 0
    %101 = vmatpush1.bf16.msra.mxu0 0
    %102 = vmatprep.subr.bf16.mxu0 0
    %103 = vmatpush1.bf16.msra.mxu0 0
    %104 = vmatprep.mubr.bf16.mxu0 0
    %105 = vmatmul.mubr.bf16.gmra.mrb[0].mxu0 %v70
    %v106 = vpop.f32.mrb[0].mxu0
    %v107 = vadd.f32 %v54, %v106
    %v108 = vpop.f32.mrb[0].mxu0
    %v109 = vpop.f32.mrb[0].mxu0
    %v110 = vadd.f32 %v54, %v109
    %v111 = vpop.f32.mrb[0].mxu0
    %112 = vdwg.mxu0
    %v113 = vmax.f32 %v107, 0.0
    %v114 = vmax.f32 %v110, 0.0
    %v115 = vpack.c.bf16 %v114, %v113
    %v116 = vld [vmem:[%s3] sm:$0xf]
    %v117 = vld [vmem:[%s3 + $0x4] sm:$0xf]
    %v118 = vld [vmem:[%s3 + $0x8] sm:$0xf]
    %v119 = vld [vmem:[%s3 + $0xc] sm:$0xf]
    %v120 = vld [vmem:[%s3 + $0x10] sm:$0xf]
    %v121 = vld [vmem:[%s3 + $0x14] sm:$0xf]
    %v122 = vld [vmem:[%s3 + $0x18] sm:$0xf]
    %v123 = vld [vmem:[%s3 + $0x1c] sm:$0xf]
    %v124 = vld [vmem:[%s3 + $0x20] sm:$0xf]
    %v125 = vld [vmem:[%s3 + $0x24] sm:$0xf]
    %v126 = vld [vmem:[%s3 + $0x28] sm:$0xf]
    %v127 = vld [vmem:[%s3 + $0x2c] sm:$0xf]
    %v128 = vld [vmem:[%s3 + $0x30] sm:$0xf]
    %v129 = vld [vmem:[%s3 + $0x34] sm:$0xf]
    %v130 = vld [vmem:[%s3 + $0x38] sm:$0xf]
    %v131 = vld [vmem:[%s3 + $0x3c] sm:$0xf]
    %v132 = vld [vmem:[%s4] sm:$0x1]
    %v134 = vlaneseq
    %v135 = vshrl.u32 %v134, 7
    %v136 = vsub.s32 0, %v135
    %v137 = vrot.slane %v132, %v136
    %v155 = vunpack.c.l.b16 %v116
    %v156 = vunpack.c.l.b16 %v117
    %v157 = vunpack.c.l.b16 %v118
    %v158 = vunpack.c.l.b16 %v119
    %v159 = vunpack.c.l.b16 %v120
    %v160 = vunpack.c.l.b16 %v121
    %v161 = vunpack.c.l.b16 %v122
    %v162 = vunpack.c.l.b16 %v123
    %v163 = vunpack.c.l.b16 %v124
    %v164 = vunpack.c.l.b16 %v125
    %v165 = vunpack.c.l.b16 %v126
    %v166 = vunpack.c.l.b16 %v127
    %v167 = vunpack.c.l.b16 %v128
    %v168 = vunpack.c.l.b16 %v129
    %v169 = vunpack.c.l.b16 %v130
    %v170 = vunpack.c.l.b16 %v131
    %v171 = vpack.c.b16 %v156, %v155
    %v172 = vpack.c.b16 %v158, %v157
    %v173 = vpack.c.b16 %v160, %v159
    %v174 = vpack.c.b16 %v162, %v161
    %v175 = vpack.c.b16 %v164, %v163
    %v176 = vpack.c.b16 %v166, %v165
    %v177 = vpack.c.b16 %v168, %v167
    %v178 = vpack.c.b16 %v170, %v169
    %187 = vmatprep.subr.bf16.mxu0 0
    %188 = vmatpush1.bf16.msra.mxu0 %v171
    %189 = vmatprep.subr.bf16.mxu0 0
    %190 = vmatpush1.bf16.msra.mxu0 %v172
    %191 = vmatprep.subr.bf16.mxu0 0
    %192 = vmatpush1.bf16.msra.mxu0 %v173
    %193 = vmatprep.subr.bf16.mxu0 0
    %194 = vmatpush1.bf16.msra.mxu0 %v174
    %195 = vmatprep.subr.bf16.mxu0 0
    %196 = vmatpush1.bf16.msra.mxu0 %v175
    %197 = vmatprep.subr.bf16.mxu0 0
    %198 = vmatpush1.bf16.msra.mxu0 %v176
    %199 = vmatprep.subr.bf16.mxu0 0
    %200 = vmatpush1.bf16.msra.mxu0 %v177
    %201 = vmatprep.subr.bf16.mxu0 0
    %202 = vmatpush1.bf16.msra.mxu0 %v178
    %203 = vmatprep.subr.bf16.mxu0 0
    %204 = vmatpush1.bf16.msra.mxu0 0
    %205 = vmatprep.subr.bf16.mxu0 0
    %206 = vmatpush1.bf16.msra.mxu0 0
    %207 = vmatprep.subr.bf16.mxu0 0
    %208 = vmatpush1.bf16.msra.mxu0 0
    %209 = vmatprep.subr.bf16.mxu0 0
    %210 = vmatpush1.bf16.msra.mxu0 0
    %211 = vmatprep.subr.bf16.mxu0 0
    %212 = vmatpush1.bf16.msra.mxu0 0
    %213 = vmatprep.subr.bf16.mxu0 0
    %214 = vmatpush1.bf16.msra.mxu0 0
    %215 = vmatprep.subr.bf16.mxu0 0
    %216 = vmatpush1.bf16.msra.mxu0 0
    %217 = vmatprep.subr.bf16.mxu0 0
    %218 = vmatpush1.bf16.msra.mxu0 0
    %219 = vmatprep.mubr.bf16.mxu0 0
    %220 = vmatmul.mubr.bf16.gmra.mrb[0].mxu0 %v115
    %v221 = vpop.f32.mrb[0].mxu0
    %v222 = vadd.f32 %v137, %v221
    %v223 = vpop.f32.mrb[0].mxu0
    %v224 = vpop.f32.mrb[0].mxu0
    %v225 = vadd.f32 %v137, %v224
    %v226 = vpop.f32.mrb[0].mxu0
    %227 = vdwg.mxu0
    %v228 = vmax.f32 %v222, 0.0
    %v229 = vmax.f32 %v225, 0.0
    %v230 = vpack.c.bf16 %v229, %v228
    %v231 = vld [vmem:[%s5] sm:$0xf]
    %v232 = vld [vmem:[%s5 + $0x4] sm:$0xf]
    %v233 = vld [vmem:[%s5 + $0x8] sm:$0xf]
    %v234 = vld [vmem:[%s5 + $0xc] sm:$0xf]
    %v235 = vld [vmem:[%s5 + $0x10] sm:$0xf]
    %v236 = vld [vmem:[%s5 + $0x14] sm:$0xf]
    %v237 = vld [vmem:[%s5 + $0x18] sm:$0xf]
    %v238 = vld [vmem:[%s5 + $0x1c] sm:$0xf]
    %v239 = vld [vmem:[%s5 + $0x20] sm:$0xf]
    %v240 = vld [vmem:[%s5 + $0x24] sm:$0xf]
    %v241 = vld [vmem:[%s5 + $0x28] sm:$0xf]
    %v242 = vld [vmem:[%s5 + $0x2c] sm:$0xf]
    %v243 = vld [vmem:[%s5 + $0x30] sm:$0xf]
    %v244 = vld [vmem:[%s5 + $0x34] sm:$0xf]
    %v245 = vld [vmem:[%s5 + $0x38] sm:$0xf]
    %v246 = vld [vmem:[%s5 + $0x3c] sm:$0xf]
    %v247 = vld [vmem:[%s6] sm:$0x1]
    %v249 = vlaneseq
    %v250 = vshrl.u32 %v249, 7
    %v251 = vsub.s32 0, %v250
    %v252 = vrot.slane %v247, %v251
    %v270 = vunpack.c.l.b16 %v231
    %v271 = vunpack.c.l.b16 %v232
    %v272 = vunpack.c.l.b16 %v233
    %v273 = vunpack.c.l.b16 %v234
    %v274 = vunpack.c.l.b16 %v235
    %v275 = vunpack.c.l.b16 %v236
    %v276 = vunpack.c.l.b16 %v237
    %v277 = vunpack.c.l.b16 %v238
    %v278 = vunpack.c.l.b16 %v239
    %v279 = vunpack.c.l.b16 %v240
    %v280 = vunpack.c.l.b16 %v241
    %v281 = vunpack.c.l.b16 %v242
    %v282 = vunpack.c.l.b16 %v243
    %v283 = vunpack.c.l.b16 %v244
    %v284 = vunpack.c.l.b16 %v245
    %v285 = vunpack.c.l.b16 %v246
    %v286 = vpack.c.b16 %v271, %v270
    %v287 = vpack.c.b16 %v273, %v272
    %v288 = vpack.c.b16 %v275, %v274
    %v289 = vpack.c.b16 %v277, %v276
    %v290 = vpack.c.b16 %v279, %v278
    %v291 = vpack.c.b16 %v281, %v280
    %v292 = vpack.c.b16 %v283, %v282
    %v293 = vpack.c.b16 %v285, %v284
    %302 = vmatprep.subr.bf16.mxu0 0
    %303 = vmatpush1.bf16.msra.mxu0 %v286
    %304 = vmatprep.subr.bf16.mxu0 0
    %305 = vmatpush1.bf16.msra.mxu0 %v287
    %306 = vmatprep.subr.bf16.mxu0 0
    %307 = vmatpush1.bf16.msra.mxu0 %v288
    %308 = vmatprep.subr.bf16.mxu0 0
    %309 = vmatpush1.bf16.msra.mxu0 %v289
    %310 = vmatprep.subr.bf16.mxu0 0
    %311 = vmatpush1.bf16.msra.mxu0 %v290
    %312 = vmatprep.subr.bf16.mxu0 0
    %313 = vmatpush1.bf16.msra.mxu0 %v291
    %314 = vmatprep.subr.bf16.mxu0 0
    %315 = vmatpush1.bf16.msra.mxu0 %v292
    %316 = vmatprep.subr.bf16.mxu0 0
    %317 = vmatpush1.bf16.msra.mxu0 %v293
    %318 = vmatprep.subr.bf16.mxu0 0
    %319 = vmatpush1.bf16.msra.mxu0 0
    %320 = vmatprep.subr.bf16.mxu0 0
    %321 = vmatpush1.bf16.msra.mxu0 0
    %322 = vmatprep.subr.bf16.mxu0 0
    %323 = vmatpush1.bf16.msra.mxu0 0
    %324 = vmatprep.subr.bf16.mxu0 0
    %325 = vmatpush1.bf16.msra.mxu0 0
    %326 = vmatprep.subr.bf16.mxu0 0
    %327 = vmatpush1.bf16.msra.mxu0 0
    %328 = vmatprep.subr.bf16.mxu0 0
    %329 = vmatpush1.bf16.msra.mxu0 0
    %330 = vmatprep.subr.bf16.mxu0 0
    %331 = vmatpush1.bf16.msra.mxu0 0
    %332 = vmatprep.subr.bf16.mxu0 0
    %333 = vmatpush1.bf16.msra.mxu0 0
    %334 = vmatprep.mubr.bf16.mxu0 0
    %335 = vmatmul.mubr.bf16.gmra.mrb[0].mxu0 %v230
    %v336 = vpop.f32.mrb[0].mxu0
    %v337 = vadd.f32 %v252, %v336
    %v338 = vpop.f32.mrb[0].mxu0
    %v339 = vpop.f32.mrb[0].mxu0
    %v340 = vadd.f32 %v252, %v339
    %v341 = vpop.f32.mrb[0].mxu0
    %342 = vdwg.mxu0
    %v343 = vlaneseq
    %v344 = vand.u32 %v343, 127
    %v345 = vmax.f32 %v337, -20.0
    %v346 = vmax.f32 %v340, -20.0
    %v347 = vmin.f32 %v345, 2.0
    %v348 = vmin.f32 %v346, 2.0
    %v349 = vmul.f32 %v347, 1.442695
    %v350 = vpow.pop %v349
    %v351 = vmul.f32 %v348, 1.442695
    %v352 = vpow.pop %v351
    %vm353 = vcmp.ge.s32.totalorder %v344, 8
    %v354 = vsel %vm353, %v350, %v337
    %v355 = vsel %vm353, %v352, %v340
    %vm356 = vcmask 130048
    %357 = vst.msk [vmem:[#allocation5] sm:$0xff] %vm356, %v354
    %358 = vst.msk [vmem:[#allocation5 + $0x8] sm:$0xff] %vm356, %v355
    // Predicated region
    $region34: #{tpu_custom_call.1} parent=1 // pred_check
      _
    $region35: #{tpu_custom_call.1} parent=1 // pred_check_branch
      %360 = sbr.rel (0) target = $region37
    $region36: #{tpu_custom_call.1} parent=1 // pred_region
      %s362 = ssub.s32 256, 256
      %363 = vsyncadd [#allocation4], %s362
      %s364 = sshll.u32 [#allocation5], 4
      %s365 = int_to_ptr.vmem [resolvable:$true] %s364
      %370 = dma.vmem_to_hbm [thread:$0]  %s365, 256, %s7, [#allocation4], 128, 128, 8
    $region37: #{tpu_custom_call.1} parent=1 // pred_fallthru
      _
    // Predicated region
    $region38: #{tpu_custom_call.1} parent=1 // pred_check
      _
    $region39: #{tpu_custom_call.1} parent=1 // pred_check_branch
      %372 = sbr.rel (0) target = $region41
    $region40: #{tpu_custom_call.1} parent=1 // pred_region
      %373 = dma.done [#allocation4], 256
    $region41: #{tpu_custom_call.1} parent=1 // pred_fallthru
      _
    %374 = vsyncpa [#allocation3], 1
    %375 = vsyncpa [#allocation4], 1

// kernel: tpu_custom_call.1
$region0: #{tpu_custom_call.1}
  #allocation0 [shape = 'u32[]', space=smem, size = 0x4, offset = 0x4, fixed_abs, tag = 'smem constant byte address 0x4 - core index']
  #allocation1 [shape = 'u32[144,128]{1,0:T(1,128)}', space=vmem, size = 0x12000, scoped, tag = 'internal scratch']
  %s0 = inlined_call_operand.vmem [shape: f32[16,32], index: 0, kind: input, shape index: {}]
  %s1 = inlined_call_operand.hbm [shape: bf16[32,128], index: 1, kind: input, shape index: {}]
  %s2 = inlined_call_operand.vmem [shape: f32[1,128], index: 2, kind: input, shape index: {}]
  %s3 = inlined_call_operand.vmem [shape: bf16[128,128], index: 3, kind: input, shape index: {}]
  %s4 = inlined_call_operand.vmem [shape: f32[1,128], index: 4, kind: input, shape index: {}]
  %s5 = inlined_call_operand.vmem [shape: bf16[128,16], index: 5, kind: input, shape index: {}]
  %s6 = inlined_call_operand.vmem [shape: f32[1,16], index: 6, kind: input, shape index: {}]
  %s7 = inlined_call_operand.hbm [shape: f32[16,16], index: 7, kind: output, shape index: {}]
  %s8 = sld [smem:[#allocation0]]
  $region42: #{tpu_custom_call.1} parent=0
    _
  %s10 = ssub.s32 1, %s8
  %s11 = scalar_select 0, %s10, %s8
  $region1: #{tpu_custom_call.1} parent=0
    #allocation2 [shape = 'u8[8192]{0}', space=vmem, size = 0x2000, scoped, tag = 'input window, operand 1, single buffered']
    #allocation3 [shape = 's32[1]{0}', space=sflag, size = 0x4, scoped, tag = 'scoped memory for tpu_custom_call.1']
    #allocation4 [shape = 's32[1]{0}', space=sflag, size = 0x4, scoped, tag = 'scoped memory for tpu_custom_call.1']
    #allocation5 [shape = 'u8[8192]{0}', space=vmem, size = 0x2000, scoped, tag = 'output window, operand 0, single buffered']
    %12 = vsyncpa [#allocation3], 0
    %13 = vsyncpa [#allocation4], 0
    // Predicated region
    $region2: #{tpu_custom_call.1} parent=1 // pred_check
      _
    $region3: #{tpu_custom_call.1} parent=1 // pred_check_branch
      %15 = sbr.rel (0) target = $region5
    $region4: #{tpu_custom_call.1} parent=1 // pred_region
      _
    $region5: #{tpu_custom_call.1} parent=1 // pred_fallthru
      _
    // Predicated region
    $region6: #{tpu_custom_call.1} parent=1 // pred_check
      _
    $region7: #{tpu_custom_call.1} parent=1 // pred_check_branch
      %17 = sbr.rel (0) target = $region9
    $region8: #{tpu_custom_call.1} parent=1 // pred_region
      %s19 = ssub.s32 256, 256
      %20 = vsyncadd [#allocation3], %s19
      %s21 = sshll.u32 [#allocation2], 4
      %s22 = int_to_ptr.vmem [resolvable:$true] %s21
      %27 = dma.hbm_to_vmem [thread:$0]  %s1, 256, %s22, [#allocation3], 64, 64, 4
    $region9: #{tpu_custom_call.1} parent=1 // pred_fallthru
      _
    // Predicated region
    $region10: #{tpu_custom_call.1} parent=1 // pred_check
      _
    $region11: #{tpu_custom_call.1} parent=1 // pred_check_branch
      %29 = sbr.rel (0) target = $region13
    $region12: #{tpu_custom_call.1} parent=1 // pred_region
      _
    $region13: #{tpu_custom_call.1} parent=1 // pred_fallthru
      _
    // Predicated region
    $region14: #{tpu_custom_call.1} parent=1 // pred_check
      _
    $region15: #{tpu_custom_call.1} parent=1 // pred_check_branch
      %31 = sbr.rel (0) target = $region17
    $region16: #{tpu_custom_call.1} parent=1 // pred_region
      _
    $region17: #{tpu_custom_call.1} parent=1 // pred_fallthru
      _
    // Predicated region
    $region18: #{tpu_custom_call.1} parent=1 // pred_check
      _
    $region19: #{tpu_custom_call.1} parent=1 // pred_check_branch
      %33 = sbr.rel (0) target = $region21
    $region20: #{tpu_custom_call.1} parent=1 // pred_region
      _
    $region21: #{tpu_custom_call.1} parent=1 // pred_fallthru
      _
    // Predicated region
    $region22: #{tpu_custom_call.1} parent=1 // pred_check
      _
    $region23: #{tpu_custom_call.1} parent=1 // pred_check_branch
      %35 = sbr.rel (0) target = $region25
    $region24: #{tpu_custom_call.1} parent=1 // pred_region
      _
    $region25: #{tpu_custom_call.1} parent=1 // pred_fallthru
      _
    // Predicated region
    $region26: #{tpu_custom_call.1} parent=1 // pred_check
      _
    $region27: #{tpu_custom_call.1} parent=1 // pred_check_branch
      %37 = sbr.rel (0) target = $region29
    $region28: #{tpu_custom_call.1} parent=1 // pred_region
      _
    $region29: #{tpu_custom_call.1} parent=1 // pred_fallthru
      _
    // Predicated region
    $region30: #{tpu_custom_call.1} parent=1 // pred_check
      _
    $region31: #{tpu_custom_call.1} parent=1 // pred_check_branch
      %39 = sbr.rel (0) target = $region33
    $region32: #{tpu_custom_call.1} parent=1 // pred_region
      %40 = dma.done [#allocation3], 256
    $region33: #{tpu_custom_call.1} parent=1 // pred_fallthru
      _
    %v42 = vld [vmem:[%s0] sm:$0xff]
    %v43 = vld [vmem:[%s0 + $0x8] sm:$0xff]
    %v44 = vpack.c.bf16 %v43, %v42
    %v45 = vld [vmem:[#allocation2] sm:$0xf]
    %v46 = vld [vmem:[#allocation2 + $0x4] sm:$0xf]
    %v47 = vld [vmem:[#allocation2 + $0x8] sm:$0xf]
    %v48 = vld [vmem:[#allocation2 + $0xc] sm:$0xf]
    %v49 = vld [vmem:[%s2] sm:$0x1]
    %v51 = vlaneseq
    %v52 = vshrl.u32 %v51, 7
    %v53 = vsub.s32 0, %v52
    %v54 = vrot.slane %v49, %v53
    %v60 = vunpack.c.l.b16 %v45
    %v61 = vunpack.c.l.b16 %v46
    %v62 = vunpack.c.l.b16 %v47
    %v63 = vunpack.c.l.b16 %v48
    %v64 = vpack.c.b16 %v61, %v60
    %v65 = vpack.c.b16 %v63, %v62
    %vm68 = vcmask 261120
    %v70 = vsel %vm68, %v44, 0
    %72 = vmatprep.subr.bf16.mxu0 0
    %73 = vmatpush1.bf16.msra.mxu0 %v64
    %74 = vmatprep.subr.bf16.mxu0 0
    %75 = vmatpush1.bf16.msra.mxu0 %v65
    %76 = vmatprep.subr.bf16.mxu0 0
    %77 = vmatpush1.bf16.msra.mxu0 0
    %78 = vmatprep.subr.bf16.mxu0 0
    %79 = vmatpush1.bf16.msra.mxu0 0
    %80 = vmatprep.subr.bf16.mxu0 0
    %81 = vmatpush1.bf16.msra.mxu0 0
    %82 = vmatprep.subr.bf16.mxu0 0
    %83 = vmatpush1.bf16.msra.mxu0 0
    %84 = vmatprep.subr.bf16.mxu0 0
    %85 = vmatpush1.bf16.msra.mxu0 0
    %86 = vmatprep.subr.bf16.mxu0 0
    %87 = vmatpush1.bf16.msra.mxu0 0
    %88 = vmatprep.subr.bf16.mxu0 0
    %89 = vmatpush1.bf16.msra.mxu0 0
    %90 = vmatprep.subr.bf16.mxu0 0
    %91 = vmatpush1.bf16.msra.mxu0 0
    %92 = vmatprep.subr.bf16.mxu0 0
    %93 = vmatpush1.bf16.msra.mxu0 0
    %94 = vmatprep.subr.bf16.mxu0 0
    %95 = vmatpush1.bf16.msra.mxu0 0
    %96 = vmatprep.subr.bf16.mxu0 0
    %97 = vmatpush1.bf16.msra.mxu0 0
    %98 = vmatprep.subr.bf16.mxu0 0
    %99 = vmatpush1.bf16.msra.mxu0 0
    %100 = vmatprep.subr.bf16.mxu0 0
    %101 = vmatpush1.bf16.msra.mxu0 0
    %102 = vmatprep.subr.bf16.mxu0 0
    %103 = vmatpush1.bf16.msra.mxu0 0
    %104 = vmatprep.mubr.bf16.mxu0 0
    %105 = vmatmul.mubr.bf16.gmra.mrb[0].mxu0 %v70
    %v106 = vpop.f32.mrb[0].mxu0
    %v107 = vadd.f32 %v54, %v106
    %v108 = vpop.f32.mrb[0].mxu0
    %v109 = vpop.f32.mrb[0].mxu0
    %v110 = vadd.f32 %v54, %v109
    %v111 = vpop.f32.mrb[0].mxu0
    %112 = vdwg.mxu0
    %v113 = vmax.f32 %v107, 0.0
    %v114 = vmax.f32 %v110, 0.0
    %v115 = vpack.c.bf16 %v114, %v113
    %v116 = vld [vmem:[%s3] sm:$0xf]
    %v117 = vld [vmem:[%s3 + $0x4] sm:$0xf]
    %v118 = vld [vmem:[%s3 + $0x8] sm:$0xf]
    %v119 = vld [vmem:[%s3 + $0xc] sm:$0xf]
    %v120 = vld [vmem:[%s3 + $0x10] sm:$0xf]
    %v121 = vld [vmem:[%s3 + $0x14] sm:$0xf]
    %v122 = vld [vmem:[%s3 + $0x18] sm:$0xf]
    %v123 = vld [vmem:[%s3 + $0x1c] sm:$0xf]
    %v124 = vld [vmem:[%s3 + $0x20] sm:$0xf]
    %v125 = vld [vmem:[%s3 + $0x24] sm:$0xf]
    %v126 = vld [vmem:[%s3 + $0x28] sm:$0xf]
    %v127 = vld [vmem:[%s3 + $0x2c] sm:$0xf]
    %v128 = vld [vmem:[%s3 + $0x30] sm:$0xf]
    %v129 = vld [vmem:[%s3 + $0x34] sm:$0xf]
    %v130 = vld [vmem:[%s3 + $0x38] sm:$0xf]
    %v131 = vld [vmem:[%s3 + $0x3c] sm:$0xf]
    %v132 = vld [vmem:[%s4] sm:$0x1]
    %v134 = vlaneseq
    %v135 = vshrl.u32 %v134, 7
    %v136 = vsub.s32 0, %v135
    %v137 = vrot.slane %v132, %v136
    %v155 = vunpack.c.l.b16 %v116
    %v156 = vunpack.c.l.b16 %v117
    %v157 = vunpack.c.l.b16 %v118
    %v158 = vunpack.c.l.b16 %v119
    %v159 = vunpack.c.l.b16 %v120
    %v160 = vunpack.c.l.b16 %v121
    %v161 = vunpack.c.l.b16 %v122
    %v162 = vunpack.c.l.b16 %v123
    %v163 = vunpack.c.l.b16 %v124
    %v164 = vunpack.c.l.b16 %v125
    %v165 = vunpack.c.l.b16 %v126
    %v166 = vunpack.c.l.b16 %v127
    %v167 = vunpack.c.l.b16 %v128
    %v168 = vunpack.c.l.b16 %v129
    %v169 = vunpack.c.l.b16 %v130
    %v170 = vunpack.c.l.b16 %v131
    %v171 = vpack.c.b16 %v156, %v155
    %v172 = vpack.c.b16 %v158, %v157
    %v173 = vpack.c.b16 %v160, %v159
    %v174 = vpack.c.b16 %v162, %v161
    %v175 = vpack.c.b16 %v164, %v163
    %v176 = vpack.c.b16 %v166, %v165
    %v177 = vpack.c.b16 %v168, %v167
    %v178 = vpack.c.b16 %v170, %v169
    %187 = vmatprep.subr.bf16.mxu0 0
    %188 = vmatpush1.bf16.msra.mxu0 %v171
    %189 = vmatprep.subr.bf16.mxu0 0
    %190 = vmatpush1.bf16.msra.mxu0 %v172
    %191 = vmatprep.subr.bf16.mxu0 0
    %192 = vmatpush1.bf16.msra.mxu0 %v173
    %193 = vmatprep.subr.bf16.mxu0 0
    %194 = vmatpush1.bf16.msra.mxu0 %v174
    %195 = vmatprep.subr.bf16.mxu0 0
    %196 = vmatpush1.bf16.msra.mxu0 %v175
    %197 = vmatprep.subr.bf16.mxu0 0
    %198 = vmatpush1.bf16.msra.mxu0 %v176
    %199 = vmatprep.subr.bf16.mxu0 0
    %200 = vmatpush1.bf16.msra.mxu0 %v177
    %201 = vmatprep.subr.bf16.mxu0 0
    %202 = vmatpush1.bf16.msra.mxu0 %v178
    %203 = vmatprep.subr.bf16.mxu0 0
    %204 = vmatpush1.bf16.msra.mxu0 0
    %205 = vmatprep.subr.bf16.mxu0 0
    %206 = vmatpush1.bf16.msra.mxu0 0
    %207 = vmatprep.subr.bf16.mxu0 0
    %208 = vmatpush1.bf16.msra.mxu0 0
    %209 = vmatprep.subr.bf16.mxu0 0
    %210 = vmatpush1.bf16.msra.mxu0 0
    %211 = vmatprep.subr.bf16.mxu0 0
    %212 = vmatpush1.bf16.msra.mxu0 0
    %213 = vmatprep.subr.bf16.mxu0 0
    %214 = vmatpush1.bf16.msra.mxu0 0
    %215 = vmatprep.subr.bf16.mxu0 0
    %216 = vmatpush1.bf16.msra.mxu0 0
    %217 = vmatprep.subr.bf16.mxu0 0
    %218 = vmatpush1.bf16.msra.mxu0 0
    %219 = vmatprep.mubr.bf16.mxu0 0
    %220 = vmatmul.mubr.bf16.gmra.mrb[0].mxu0 %v115
    %v221 = vpop.f32.mrb[0].mxu0
    %v222 = vadd.f32 %v137, %v221
    %v223 = vpop.f32.mrb[0].mxu0
    %v224 = vpop.f32.mrb[0].mxu0
    %v225 = vadd.f32 %v137, %v224
    %v226 = vpop.f32.mrb[0].mxu0
    %227 = vdwg.mxu0
    %v228 = vmax.f32 %v222, 0.0
    %v229 = vmax.f32 %v225, 0.0
    %v230 = vpack.c.bf16 %v229, %v228
    %v231 = vld [vmem:[%s5] sm:$0xf]
    %v232 = vld [vmem:[%s5 + $0x4] sm:$0xf]
    %v233 = vld [vmem:[%s5 + $0x8] sm:$0xf]
    %v234 = vld [vmem:[%s5 + $0xc] sm:$0xf]
    %v235 = vld [vmem:[%s5 + $0x10] sm:$0xf]
    %v236 = vld [vmem:[%s5 + $0x14] sm:$0xf]
    %v237 = vld [vmem:[%s5 + $0x18] sm:$0xf]
    %v238 = vld [vmem:[%s5 + $0x1c] sm:$0xf]
    %v239 = vld [vmem:[%s5 + $0x20] sm:$0xf]
    %v240 = vld [vmem:[%s5 + $0x24] sm:$0xf]
    %v241 = vld [vmem:[%s5 + $0x28] sm:$0xf]
    %v242 = vld [vmem:[%s5 + $0x2c] sm:$0xf]
    %v243 = vld [vmem:[%s5 + $0x30] sm:$0xf]
    %v244 = vld [vmem:[%s5 + $0x34] sm:$0xf]
    %v245 = vld [vmem:[%s5 + $0x38] sm:$0xf]
    %v246 = vld [vmem:[%s5 + $0x3c] sm:$0xf]
    %v247 = vld [vmem:[%s6] sm:$0x1]
    %v249 = vlaneseq
    %v250 = vshrl.u32 %v249, 7
    %v251 = vsub.s32 0, %v250
    %v252 = vrot.slane %v247, %v251
    %v270 = vunpack.c.l.b16 %v231
    %v271 = vunpack.c.l.b16 %v232
    %v272 = vunpack.c.l.b16 %v233
    %v273 = vunpack.c.l.b16 %v234
    %v274 = vunpack.c.l.b16 %v235
    %v275 = vunpack.c.l.b16 %v236
    %v276 = vunpack.c.l.b16 %v237
    %v277 = vunpack.c.l.b16 %v238
    %v278 = vunpack.c.l.b16 %v239
    %v279 = vunpack.c.l.b16 %v240
    %v280 = vunpack.c.l.b16 %v241
    %v281 = vunpack.c.l.b16 %v242
    %v282 = vunpack.c.l.b16 %v243
    %v283 = vunpack.c.l.b16 %v244
    %v284 = vunpack.c.l.b16 %v245
    %v285 = vunpack.c.l.b16 %v246
    %v286 = vpack.c.b16 %v271, %v270
    %v287 = vpack.c.b16 %v273, %v272
    %v288 = vpack.c.b16 %v275, %v274
    %v289 = vpack.c.b16 %v277, %v276
    %v290 = vpack.c.b16 %v279, %v278
    %v291 = vpack.c.b16 %v281, %v280
    %v292 = vpack.c.b16 %v283, %v282
    %v293 = vpack.c.b16 %v285, %v284
    %302 = vmatprep.subr.bf16.mxu0 0
    %303 = vmatpush1.bf16.msra.mxu0 %v286
    %304 = vmatprep.subr.bf16.mxu0 0
    %305 = vmatpush1.bf16.msra.mxu0 %v287
    %306 = vmatprep.subr.bf16.mxu0 0
    %307 = vmatpush1.bf16.msra.mxu0 %v288
    %308 = vmatprep.subr.bf16.mxu0 0
    %309 = vmatpush1.bf16.msra.mxu0 %v289
    %310 = vmatprep.subr.bf16.mxu0 0
    %311 = vmatpush1.bf16.msra.mxu0 %v290
    %312 = vmatprep.subr.bf16.mxu0 0
    %313 = vmatpush1.bf16.msra.mxu0 %v291
    %314 = vmatprep.subr.bf16.mxu0 0
    %315 = vmatpush1.bf16.msra.mxu0 %v292
    %316 = vmatprep.subr.bf16.mxu0 0
    %317 = vmatpush1.bf16.msra.mxu0 %v293
    %318 = vmatprep.subr.bf16.mxu0 0
    %319 = vmatpush1.bf16.msra.mxu0 0
    %320 = vmatprep.subr.bf16.mxu0 0
    %321 = vmatpush1.bf16.msra.mxu0 0
    %322 = vmatprep.subr.bf16.mxu0 0
    %323 = vmatpush1.bf16.msra.mxu0 0
    %324 = vmatprep.subr.bf16.mxu0 0
    %325 = vmatpush1.bf16.msra.mxu0 0
    %326 = vmatprep.subr.bf16.mxu0 0
    %327 = vmatpush1.bf16.msra.mxu0 0
    %328 = vmatprep.subr.bf16.mxu0 0
    %329 = vmatpush1.bf16.msra.mxu0 0
    %330 = vmatprep.subr.bf16.mxu0 0
    %331 = vmatpush1.bf16.msra.mxu0 0
    %332 = vmatprep.subr.bf16.mxu0 0
    %333 = vmatpush1.bf16.msra.mxu0 0
    %334 = vmatprep.mubr.bf16.mxu0 0
    %335 = vmatmul.mubr.bf16.gmra.mrb[0].mxu0 %v230
    %v336 = vpop.f32.mrb[0].mxu0
    %v337 = vadd.f32 %v252, %v336
    %v338 = vpop.f32.mrb[0].mxu0
    %v339 = vpop.f32.mrb[0].mxu0
    %v340 = vadd.f32 %v252, %v339
    %v341 = vpop.f32.mrb[0].mxu0
    %342 = vdwg.mxu0
    %v343 = vlaneseq
    %v344 = vand.u32 %v343, 127
    %v345 = vmax.f32 %v337, -20.0
    %v346 = vmax.f32 %v340, -20.0
    %v347 = vmin.f32 %v345, 2.0
    %v348 = vmin.f32 %v346, 2.0
    %v349 = vmul.f32 %v347, 1.442695
    %v350 = vpow.pop %v349
    %v351 = vmul.f32 %v348, 1.442695
    %v352 = vpow.pop %v351
    %vm353 = vcmp.ge.s32.totalorder %v344, 8
    %v354 = vsel %vm353, %v350, %v337
    %v355 = vsel %vm353, %v352, %v340
    %vm356 = vcmask 130048
    %357 = vst.msk [vmem:[#allocation5] sm:$0xff] %vm356, %v354
    %358 = vst.msk [vmem:[#allocation5 + $0x8] sm:$0xff] %vm356, %v355
    // Predicated region
    $region34: #{tpu_custom_call.1} parent=1 // pred_check
      _
    $region35: #{tpu_custom_call.1} parent=1 // pred_check_branch
      %360 = sbr.rel (0) target = $region37
    $region36: #{tpu_custom_call.1} parent=1 // pred_region
      %s362 = ssub.s32 256, 256
      %363 = vsyncadd [#allocation4], %s362
      %s364 = sshll.u32 [#allocation5], 4
      %s365 = int_to_ptr.vmem [resolvable:$true] %s364
      %370 = dma.vmem_to_hbm [thread:$0]  %s365, 256, %s7, [#allocation4], 128, 128, 8
    $region37: #{tpu_custom_call.1} parent=1 // pred_fallthru
      _
    // Predicated region
    $region38: #{tpu_custom_call.1} parent=1 // pred_check
      _
    $region39: #{tpu_custom_call.1} parent=1 // pred_check_branch
      %372 = sbr.rel (0) target = $region41
    $region40: #{tpu_custom_call.1} parent=1 // pred_region
      %373 = dma.done [#allocation4], 256
    $region41: #{tpu_custom_call.1} parent=1 // pred_fallthru
      _
    %374 = vsyncpa [#allocation3], 1
    %375 = vsyncpa [#allocation4], 1

</llo_original>
